<compile_context>
chip_gen: v7x
topology: tpu7x:2x2x1
jax: 0.10.0
libtpu: 0.0.40
codegen_flags: <defaults>
</compile_context>

<pallas_src>
import functools

import jax
import jax.numpy as jnp
from jax.experimental import pallas as pl
from jax.experimental.pallas import tpu as pltpu

# ---- config (synthetic, small) ------------------------------------------------
VOCAB_SIZE = 64
HIDDEN_SIZE = 32
MAX_POSITION_EMBEDDINGS = 32
TYPE_VOCAB_SIZE = 2
PAD_TOKEN_ID = 0
LAYER_NORM_EPS = 1e-12
HIDDEN_DROPOUT_PROB = 0.1  # eval-mode dropout == identity


def _round_up(x, m):
    return (x + m - 1) // m * m


# ---- kernel -------------------------------------------------------------------
def _embeddings_kernel(idx_ref,                    # (TOKP, 3*PACK) int32, fused+offset indices
                       table_ref,                  # (PACK*K0, PACK*H) block-diagonal fused table
                       seg_ref,                    # (PACK*H, PACK*H) per-token segment-mean matrix
                       gamma_ref, beta_ref,        # (1, PACK*H) tiled LayerNorm params
                       out_ref,                    # (TOKP, PACK*H) lane-dense output tile
                       *, eps):
    rows, ncmp = idx_ref.shape
    kdim = table_ref.shape[0]

    # One-hot over the fused, block-offset index space. All ncmp index columns hit
    # distinct lanes per row, so OR-of-compares is an exact multi-hot with 0/1 entries.
    iota = jax.lax.broadcasted_iota(jnp.int32, (rows, kdim), 1)
    hits = idx_ref[:, 0:1] == iota
    for m in range(1, ncmp):
        hits = jnp.logical_or(hits, idx_ref[:, m:m + 1] == iota)
    onehot = hits.astype(jnp.float32)

    # Single MXU matmul = gather + (word + position + token_type) sum, emitted directly
    # in the packed (PACK tokens per 128-lane row) layout.
    x = jnp.dot(onehot, table_ref[...], preferred_element_type=jnp.float32)

    # LayerNorm per token == per H-lane segment of each packed row.
    # seg_ref broadcasts each segment's mean back to all of that segment's lanes.
    mean = jnp.dot(x, seg_ref[...], preferred_element_type=jnp.float32)
    xc = x - mean
    var = jnp.dot(xc * xc, seg_ref[...], preferred_element_type=jnp.float32)
    y = xc * jax.lax.rsqrt(var + eps)
    out_ref[...] = (y * gamma_ref[...] + beta_ref[...]).astype(out_ref.dtype)
    # TODO(synk): training-mode dropout (HIDDEN_DROPOUT_PROB) not implemented;
    # eval-mode nn.Dropout is identity, which this matches.


# ---- wrapper ------------------------------------------------------------------
def zephyra_embeddings(input_ids, word_emb, pos_emb, type_emb, gamma, beta,
                       token_type_ids=None, position_ids=None,
                       past_key_values_length=0, eps=LAYER_NORM_EPS,
                       out_dtype=jnp.float32):
    B, S = input_ids.shape
    V, H = word_emb.shape
    P = pos_emb.shape[0]
    T = type_emb.shape[0]

    if token_type_ids is None:
        token_type_ids = jnp.zeros((B, S), dtype=jnp.int32)
    if position_ids is None:
        position_ids = jnp.broadcast_to(
            jnp.arange(past_key_values_length,
                       past_key_values_length + S, dtype=jnp.int32)[None, :],
            (B, S))
    else:
        position_ids = jnp.broadcast_to(position_ids, (B, S)).astype(jnp.int32)

    # --- fused gather table ------------------------------------------------
    # rows: [word (V) | position (P) | token_type (T) | zero pad] -> K0 rows
    K0 = _round_up(V + P + T, 128)
    fused = jnp.zeros((K0, H), jnp.float32)
    fused = fused.at[:V].set(word_emb.astype(jnp.float32))
    fused = fused.at[V:V + P].set(pos_emb.astype(jnp.float32))
    fused = fused.at[V + P:V + P + T].set(type_emb.astype(jnp.float32))

    # Pack PACK tokens per 128-lane output row -> lane-dense stores.
    PACK = 128 // H if (H < 128 and 128 % H == 0) else 1
    LANES = PACK * H
    KDIM = PACK * K0

    # Block-diagonal table: row (j*K0 + v) carries fused[v] at lanes [j*H, (j+1)*H).
    table = jnp.zeros((KDIM, LANES), jnp.float32)
    for j in range(PACK):
        table = table.at[j * K0:(j + 1) * K0, j * H:(j + 1) * H].set(fused)

    # Segment-mean matrix: 1/H inside each token's H-lane group, 0 elsewhere.
    grp = jnp.arange(LANES) // H
    seg = (grp[:, None] == grp[None, :]).astype(jnp.float32) / H

    gamma_p = jnp.tile(gamma.reshape(-1).astype(jnp.float32), PACK).reshape(1, LANES)
    beta_p = jnp.tile(beta.reshape(-1).astype(jnp.float32), PACK).reshape(1, LANES)

    # VMEM-residency guard for the fully-resident gather path.
    resident_bytes = (KDIM * LANES + LANES * LANES) * 4
    if resident_bytes > 8 * 1024 * 1024:
        # TODO(synk): scalar-prefetch / manual-DMA row-gather fallback for production
        # vocab sizes whose table does not fit in VMEM (v7x physical VMEM is 64 MiB).
        raise NotImplementedError(
            "embedding tables too large for the VMEM-resident one-hot gather path")

    # --- indices -------------------------------------------------------------
    NT = B * S
    GRAN = PACK * 8                       # token-block granularity: 8 packed sublane rows
    # >=2 grid steps whenever possible (v7x megacore), <=512 tokens/step.
    TOK = min(512, max(GRAN, _round_up(-(-NT // 2), GRAN)))
    NT_pad = _round_up(NT, TOK)
    TOKP = TOK // PACK                    # packed rows per grid step

    def pad_flat(a):
        f = a.reshape(-1).astype(jnp.int32)
        return jnp.pad(f, (0, NT_pad - NT))   # padded tokens index valid row 0

    iw = pad_flat(input_ids)                       # word rows:      [0, V)
    ip = pad_flat(position_ids) + V                # position rows:  [V, V+P)
    it = pad_flat(token_type_ids) + (V + P)        # token_type rows:[V+P, V+P+T)
    idx3 = jnp.stack([iw, ip, it], axis=-1)                         # (NT_pad, 3)
    idx = (idx3.reshape(NT_pad // PACK, PACK, 3)
           + (jnp.arange(PACK, dtype=jnp.int32) * K0)[None, :, None])
    idx = idx.reshape(NT_pad // PACK, 3 * PACK).astype(jnp.int32)   # (NTP, 3*PACK)

    grid = (NT_pad // TOK,)

    grid_spec = pltpu.PrefetchScalarGridSpec(
        num_scalar_prefetch=0,
        grid=grid,
        in_specs=[
            # one collapsed per-block index tile (replaces 3 tiny inputs)
            pl.BlockSpec((TOKP, 3 * PACK), lambda i: (i, 0)),
            # VMEM-resident fused block-diagonal table (constant index_map)
            pl.BlockSpec((KDIM, LANES), lambda i: (0, 0)),
            # segment-mean matrix for packed LayerNorm
            pl.BlockSpec((LANES, LANES), lambda i: (0, 0)),
            # LayerNorm scale / bias (tiled to the packed lane layout)
            pl.BlockSpec((1, LANES), lambda i: (0, 0)),
            pl.BlockSpec((1, LANES), lambda i: (0, 0)),
        ],
        out_specs=pl.BlockSpec((TOKP, LANES), lambda i: (i, 0)),
    )

    out = pl.pallas_call(
        functools.partial(_embeddings_kernel, eps=eps),
        grid_spec=grid_spec,
        out_shape=jax.ShapeDtypeStruct((NT_pad // PACK, LANES), out_dtype),
        compiler_params=pltpu.CompilerParams(
            dimension_semantics=("parallel",)),   # disjoint output blocks -> 2 TCs on v7x
    )(idx, table, seg, gamma_p, beta_p)

    # Packed (NTP, PACK*H) row-major layout is identical to flat (NT_pad, H):
    # this reshape is metadata-only.
    return out.reshape(NT_pad, H)[:NT].reshape(B, S, H)


# ---- pure-JAX reference (for sanity check) -------------------------------------
def _reference(input_ids, word_emb, pos_emb, type_emb, gamma, beta,
               token_type_ids=None, position_ids=None,
               past_key_values_length=0, eps=LAYER_NORM_EPS):
    B, S = input_ids.shape
    if token_type_ids is None:
        token_type_ids = jnp.zeros((B, S), dtype=jnp.int32)
    if position_ids is None:
        position_ids = jnp.broadcast_to(
            jnp.arange(past_key_values_length,
                       past_key_values_length + S, dtype=jnp.int32)[None, :],
            (B, S))
    x = word_emb[input_ids] + type_emb[token_type_ids] + pos_emb[position_ids]
    mean = jnp.mean(x, axis=-1, keepdims=True)
    var = jnp.mean((x - mean) ** 2, axis=-1, keepdims=True)
    return (x - mean) * jax.lax.rsqrt(var + eps) * gamma + beta


# ---- main ----------------------------------------------------------------------
if __name__ == "__main__":
    key = jax.random.PRNGKey(0)
    k_w, k_p, k_t, k_ids, k_tt, k_ids2, k_tt2 = jax.random.split(key, 7)

    # Deterministic parameter init (std=0.02 normals, like init_weights()).
    word_emb = 0.02 * jax.random.normal(k_w, (VOCAB_SIZE, HIDDEN_SIZE), dtype=jnp.float32)
    pos_emb = 0.02 * jax.random.normal(k_p, (MAX_POSITION_EMBEDDINGS, HIDDEN_SIZE), dtype=jnp.float32)
    type_emb = 0.02 * jax.random.normal(k_t, (TYPE_VOCAB_SIZE, HIDDEN_SIZE), dtype=jnp.float32)
    gamma = jnp.ones((HIDDEN_SIZE,), dtype=jnp.float32)
    beta = jnp.zeros((HIDDEN_SIZE,), dtype=jnp.float32)

    # small case (single grid step)
    B, S = 2, 8
    input_ids = jax.random.randint(k_ids, (B, S), 0, VOCAB_SIZE, dtype=jnp.int32)
    token_type_ids = jax.random.randint(k_tt, (B, S), 0, TYPE_VOCAB_SIZE, dtype=jnp.int32)

    out0 = jax.block_until_ready(
        zephyra_embeddings(input_ids, word_emb, pos_emb, type_emb, gamma, beta))
    ref0 = _reference(input_ids, word_emb, pos_emb, type_emb, gamma, beta)
    assert out0.shape == (B, S, HIDDEN_SIZE)
    assert jnp.allclose(out0, ref0, atol=1e-5, rtol=1e-5), "mismatch vs reference (default tt)"

    out1 = jax.block_until_ready(
        zephyra_embeddings(input_ids, word_emb, pos_emb, type_emb, gamma, beta,
                           token_type_ids=token_type_ids))
    ref1 = _reference(input_ids, word_emb, pos_emb, type_emb, gamma, beta,
                      token_type_ids=token_type_ids)
    assert jnp.allclose(out1, ref1, atol=1e-5, rtol=1e-5), "mismatch vs reference (random tt)"

    # larger case exercising a multi-step grid (2 blocks -> megacore-shardable on v7x)
    B2, S2 = 8, 32
    input_ids2 = jax.random.randint(k_ids2, (B2, S2), 0, VOCAB_SIZE, dtype=jnp.int32)
    token_type_ids2 = jax.random.randint(k_tt2, (B2, S2), 0, TYPE_VOCAB_SIZE, dtype=jnp.int32)
    out2 = jax.block_until_ready(
        zephyra_embeddings(input_ids2, word_emb, pos_emb, type_emb, gamma, beta,
                           token_type_ids=token_type_ids2))
    ref2 = _reference(input_ids2, word_emb, pos_emb, type_emb, gamma, beta,
                      token_type_ids=token_type_ids2)
    assert out2.shape == (B2, S2, HIDDEN_SIZE)
    assert jnp.allclose(out2, ref2, atol=1e-5, rtol=1e-5), "mismatch vs reference (multi-block)"

    print("KERNEL_OK")
</pallas_src>

<mosaic_0001>
module attributes {stable_mosaic.version = 11 : i64} {
  func.func @_embeddings_kernel(%arg0: i32, %arg1: memref<8x12xi32, #tpu.memory_space<vmem>>, %arg2: memref<512x128xf32, #tpu.memory_space<vmem>>, %arg3: memref<128x128xf32, #tpu.memory_space<vmem>>, %arg4: memref<1x128xf32, #tpu.memory_space<vmem>>, %arg5: memref<1x128xf32, #tpu.memory_space<vmem>>, %arg6: memref<8x128xf32, #tpu.memory_space<vmem>>) attributes {dimension_semantics = [#tpu.dimension_semantics<parallel>], iteration_bounds = array<i64: 1>, scalar_prefetch = 0 : i64, scratch_operands = 0 : i64, tpu.core_type = #tpu.core_type<tc>, window_params = [{transform_indices = @transform_0, window_bounds = array<i64: 8, 12>}, {pipeline_mode = #tpu.pipeline_mode<synchronous>, transform_indices = @transform_1, window_bounds = array<i64: 512, 128>}, {pipeline_mode = #tpu.pipeline_mode<synchronous>, transform_indices = @transform_2, window_bounds = array<i64: 128, 128>}, {pipeline_mode = #tpu.pipeline_mode<synchronous>, transform_indices = @transform_3, window_bounds = array<i64: 1, 128>}, {pipeline_mode = #tpu.pipeline_mode<synchronous>, transform_indices = @transform_4, window_bounds = array<i64: 1, 128>}, {transform_indices = @transform_5, window_bounds = array<i64: 8, 128>}]} {
    %0 = tpu.iota {dimensions = array<i32: 1>} : vector<8x512xi32>
    %c0 = arith.constant 0 : index
    %c0_0 = arith.constant 0 : index
    %1 = vector.load %arg1[%c0, %c0_0] : memref<8x12xi32, #tpu.memory_space<vmem>>, vector<8x1xi32>
    %2 = vector.broadcast %1 : vector<8x1xi32> to vector<8x512xi32>
    %3 = arith.cmpi eq, %2, %0 : vector<8x512xi32>
    %c0_1 = arith.constant 0 : index
    %c1 = arith.constant 1 : index
    %4 = vector.load %arg1[%c0_1, %c1] : memref<8x12xi32, #tpu.memory_space<vmem>>, vector<8x1xi32>
    %5 = vector.broadcast %4 : vector<8x1xi32> to vector<8x512xi32>
    %6 = arith.cmpi eq, %5, %0 : vector<8x512xi32>
    %7 = arith.ori %3, %6 : vector<8x512xi1>
    %c0_2 = arith.constant 0 : index
    %c2 = arith.constant 2 : index
    %8 = vector.load %arg1[%c0_2, %c2] : memref<8x12xi32, #tpu.memory_space<vmem>>, vector<8x1xi32>
    %9 = vector.broadcast %8 : vector<8x1xi32> to vector<8x512xi32>
    %10 = arith.cmpi eq, %9, %0 : vector<8x512xi32>
    %11 = arith.ori %7, %10 : vector<8x512xi1>
    %c0_3 = arith.constant 0 : index
    %c3 = arith.constant 3 : index
    %12 = vector.load %arg1[%c0_3, %c3] : memref<8x12xi32, #tpu.memory_space<vmem>>, vector<8x1xi32>
    %13 = vector.broadcast %12 : vector<8x1xi32> to vector<8x512xi32>
    %14 = arith.cmpi eq, %13, %0 : vector<8x512xi32>
    %15 = arith.ori %11, %14 : vector<8x512xi1>
    %c0_4 = arith.constant 0 : index
    %c4 = arith.constant 4 : index
    %16 = vector.load %arg1[%c0_4, %c4] : memref<8x12xi32, #tpu.memory_space<vmem>>, vector<8x1xi32>
    %17 = vector.broadcast %16 : vector<8x1xi32> to vector<8x512xi32>
    %18 = arith.cmpi eq, %17, %0 : vector<8x512xi32>
    %19 = arith.ori %15, %18 : vector<8x512xi1>
    %c0_5 = arith.constant 0 : index
    %c5 = arith.constant 5 : index
    %20 = vector.load %arg1[%c0_5, %c5] : memref<8x12xi32, #tpu.memory_space<vmem>>, vector<8x1xi32>
    %21 = vector.broadcast %20 : vector<8x1xi32> to vector<8x512xi32>
    %22 = arith.cmpi eq, %21, %0 : vector<8x512xi32>
    %23 = arith.ori %19, %22 : vector<8x512xi1>
    %c0_6 = arith.constant 0 : index
    %c6 = arith.constant 6 : index
    %24 = vector.load %arg1[%c0_6, %c6] : memref<8x12xi32, #tpu.memory_space<vmem>>, vector<8x1xi32>
    %25 = vector.broadcast %24 : vector<8x1xi32> to vector<8x512xi32>
    %26 = arith.cmpi eq, %25, %0 : vector<8x512xi32>
    %27 = arith.ori %23, %26 : vector<8x512xi1>
    %c0_7 = arith.constant 0 : index
    %c7 = arith.constant 7 : index
    %28 = vector.load %arg1[%c0_7, %c7] : memref<8x12xi32, #tpu.memory_space<vmem>>, vector<8x1xi32>
    %29 = vector.broadcast %28 : vector<8x1xi32> to vector<8x512xi32>
    %30 = arith.cmpi eq, %29, %0 : vector<8x512xi32>
    %31 = arith.ori %27, %30 : vector<8x512xi1>
    %c0_8 = arith.constant 0 : index
    %c8 = arith.constant 8 : index
    %32 = vector.load %arg1[%c0_8, %c8] : memref<8x12xi32, #tpu.memory_space<vmem>>, vector<8x1xi32>
    %33 = vector.broadcast %32 : vector<8x1xi32> to vector<8x512xi32>
    %34 = arith.cmpi eq, %33, %0 : vector<8x512xi32>
    %35 = arith.ori %31, %34 : vector<8x512xi1>
    %c0_9 = arith.constant 0 : index
    %c9 = arith.constant 9 : index
    %36 = vector.load %arg1[%c0_9, %c9] : memref<8x12xi32, #tpu.memory_space<vmem>>, vector<8x1xi32>
    %37 = vector.broadcast %36 : vector<8x1xi32> to vector<8x512xi32>
    %38 = arith.cmpi eq, %37, %0 : vector<8x512xi32>
    %39 = arith.ori %35, %38 : vector<8x512xi1>
    %c0_10 = arith.constant 0 : index
    %c10 = arith.constant 10 : index
    %40 = vector.load %arg1[%c0_10, %c10] : memref<8x12xi32, #tpu.memory_space<vmem>>, vector<8x1xi32>
    %41 = vector.broadcast %40 : vector<8x1xi32> to vector<8x512xi32>
    %42 = arith.cmpi eq, %41, %0 : vector<8x512xi32>
    %43 = arith.ori %39, %42 : vector<8x512xi1>
    %c0_11 = arith.constant 0 : index
    %c11 = arith.constant 11 : index
    %44 = vector.load %arg1[%c0_11, %c11] : memref<8x12xi32, #tpu.memory_space<vmem>>, vector<8x1xi32>
    %45 = vector.broadcast %44 : vector<8x1xi32> to vector<8x512xi32>
    %46 = arith.cmpi eq, %45, %0 : vector<8x512xi32>
    %47 = arith.ori %43, %46 : vector<8x512xi1>
    %48 = arith.extui %47 : vector<8x512xi1> to vector<8x512xi32>
    %49 = arith.sitofp %48 : vector<8x512xi32> to vector<8x512xf32>
    %c0_12 = arith.constant 0 : index
    %c0_13 = arith.constant 0 : index
    %50 = vector.load %arg2[%c0_12, %c0_13] : memref<512x128xf32, #tpu.memory_space<vmem>>, vector<512x128xf32>
    %cst = arith.constant dense<0.000000e+00> : vector<8x128xf32>
    %51 = tpu.matmul %49, %50, %cst {dimension_numbers = #tpu.dot_dimension_numbers<[1], [0], [0], [1], [0, 0, 1, 1], [], []>} : vector<8x512xf32>, vector<512x128xf32>, vector<8x128xf32> -> vector<8x128xf32>
    %c0_14 = arith.constant 0 : index
    %c0_15 = arith.constant 0 : index
    %52 = vector.load %arg3[%c0_14, %c0_15] : memref<128x128xf32, #tpu.memory_space<vmem>>, vector<128x128xf32>
    %cst_16 = arith.constant dense<0.000000e+00> : vector<8x128xf32>
    %53 = tpu.matmul %51, %52, %cst_16 {dimension_numbers = #tpu.dot_dimension_numbers<[1], [0], [0], [1], [0, 0, 1, 1], [], []>} : vector<8x128xf32>, vector<128x128xf32>, vector<8x128xf32> -> vector<8x128xf32>
    %54 = arith.subf %51, %53 : vector<8x128xf32>
    %55 = arith.mulf %54, %54 : vector<8x128xf32>
    %c0_17 = arith.constant 0 : index
    %c0_18 = arith.constant 0 : index
    %56 = vector.load %arg3[%c0_17, %c0_18] : memref<128x128xf32, #tpu.memory_space<vmem>>, vector<128x128xf32>
    %cst_19 = arith.constant dense<0.000000e+00> : vector<8x128xf32>
    %57 = tpu.matmul %55, %56, %cst_19 {dimension_numbers = #tpu.dot_dimension_numbers<[1], [0], [0], [1], [0, 0, 1, 1], [], []>} : vector<8x128xf32>, vector<128x128xf32>, vector<8x128xf32> -> vector<8x128xf32>
    %cst_20 = arith.constant 9.99999996E-13 : f32
    %58 = vector.broadcast %cst_20 : f32 to vector<8x128xf32>
    %59 = arith.addf %57, %58 : vector<8x128xf32>
    %60 = math.rsqrt %59 : vector<8x128xf32>
    %61 = arith.mulf %54, %60 : vector<8x128xf32>
    %c0_21 = arith.constant 0 : index
    %c0_22 = arith.constant 0 : index
    %62 = vector.load %arg4[%c0_21, %c0_22] : memref<1x128xf32, #tpu.memory_space<vmem>>, vector<1x128xf32>
    %63 = vector.broadcast %62 : vector<1x128xf32> to vector<8x128xf32>
    %64 = arith.mulf %61, %63 : vector<8x128xf32>
    %c0_23 = arith.constant 0 : index
    %c0_24 = arith.constant 0 : index
    %65 = vector.load %arg5[%c0_23, %c0_24] : memref<1x128xf32, #tpu.memory_space<vmem>>, vector<1x128xf32>
    %66 = vector.broadcast %65 : vector<1x128xf32> to vector<8x128xf32>
    %67 = arith.addf %64, %66 : vector<8x128xf32>
    %c0_25 = arith.constant 0 : index
    %c0_26 = arith.constant 0 : index
    %68 = vector.load %arg6[%c0_25, %c0_26] : memref<8x128xf32, #tpu.memory_space<vmem>>, vector<8x128xf32>
    tpu.vector_store %arg6[%c0_25, %c0_26], %67 {strides = array<i32>} : memref<8x128xf32, #tpu.memory_space<vmem>>, vector<8x128xf32>,
    return
  }
  func.func @transform_0(%arg0: i32) -> (i32, i32) {
    %c0_i32 = arith.constant 0 : i32
    %c0_i32_0 = arith.constant 0 : i32
    return %arg0, %c0_i32 : i32, i32
  }
  func.func @transform_1(%arg0: i32) -> (i32, i32) {
    %c0_i32 = arith.constant 0 : i32
    %c0_i32_0 = arith.constant 0 : i32
    %c0_i32_1 = arith.constant 0 : i32
    return %c0_i32, %c0_i32_0 : i32, i32
  }
  func.func @transform_2(%arg0: i32) -> (i32, i32) {
    %c0_i32 = arith.constant 0 : i32
    %c0_i32_0 = arith.constant 0 : i32
    %c0_i32_1 = arith.constant 0 : i32
    return %c0_i32, %c0_i32_0 : i32, i32
  }
  func.func @transform_3(%arg0: i32) -> (i32, i32) {
    %c0_i32 = arith.constant 0 : i32
    %c0_i32_0 = arith.constant 0 : i32
    %c0_i32_1 = arith.constant 0 : i32
    return %c0_i32, %c0_i32_0 : i32, i32
  }
  func.func @transform_4(%arg0: i32) -> (i32, i32) {
    %c0_i32 = arith.constant 0 : i32
    %c0_i32_0 = arith.constant 0 : i32
    %c0_i32_1 = arith.constant 0 : i32
    return %c0_i32, %c0_i32_0 : i32, i32
  }
  func.func @transform_5(%arg0: i32) -> (i32, i32) {
    %c0_i32 = arith.constant 0 : i32
    %c0_i32_0 = arith.constant 0 : i32
    return %arg0, %c0_i32 : i32, i32
  }
}

</mosaic_0001>

<llo_original>
// kernel: tpu_custom_call.1
$region0: #{tpu_custom_call.1}
  #allocation0 [shape = 'u32[]', space=smem, size = 0x4, offset = 0x4, fixed_abs, tag = 'smem constant byte address 0x4 - core index']
  #allocation1 [shape = 'u32[144,128]{1,0:T(1,128)}', space=vmem, size = 0x12000, scoped, tag = 'internal scratch']
  %s0 = inlined_call_operand.hbm [shape: s32[8,12], index: 0, kind: input, shape index: {}]
  %s1 = inlined_call_operand.hbm [shape: f32[512,128], index: 1, kind: input, shape index: {}]
  %s2 = inlined_call_operand.hbm [shape: f32[128,128], index: 2, kind: input, shape index: {}]
  %s3 = inlined_call_operand.vmem [shape: f32[1,128], index: 3, kind: input, shape index: {}]
  %s4 = inlined_call_operand.vmem [shape: f32[1,128], index: 4, kind: input, shape index: {}]
  %s5 = inlined_call_operand.hbm [shape: f32[8,128], index: 5, kind: output, shape index: {}]
  %s6 = sld [smem:[#allocation0]]
  $region42: #{tpu_custom_call.1} parent=0
    _
  %s8 = ssub.s32 1, %s6
  %s9 = scalar_select 0, %s8, %s6
  $region1: #{tpu_custom_call.1} parent=0
    #allocation2 [shape = 'u8[4096]{0}', space=vmem, size = 0x1000, scoped, tag = 'input window, operand 0, single buffered']
    #allocation3 [shape = 's32[1]{0}', space=sflag, size = 0x4, scoped, tag = 'scoped memory for tpu_custom_call.1']
    #allocation4 [shape = 's32[1]{0}', space=sflag, size = 0x4, scoped, tag = 'scoped memory for tpu_custom_call.1']
    #allocation5 [shape = 'u8[262144]{0}', space=vmem, size = 0x40000, scoped, tag = 'input window, operand 1, single buffered']
    #allocation6 [shape = 's32[1]{0}', space=sflag, size = 0x4, scoped, tag = 'scoped memory for tpu_custom_call.1']
    #allocation7 [shape = 'u8[65536]{0}', space=vmem, size = 0x10000, scoped, tag = 'input window, operand 2, single buffered']
    #allocation8 [shape = 'u8[4096]{0}', space=vmem, size = 0x1000, scoped, tag = 'output window, operand 0, single buffered']
    %10 = vsyncpa [#allocation3], 0
    %11 = vsyncpa [#allocation6], 0
    %12 = vsyncpa [#allocation4], 0
    // Predicated region
    $region2: #{tpu_custom_call.1} parent=1 // pred_check
      _
    $region3: #{tpu_custom_call.1} parent=1 // pred_check_branch
      %14 = sbr.rel (0) target = $region5
    $region4: #{tpu_custom_call.1} parent=1 // pred_region
      %s16 = ssub.s32 128, 128
      %17 = vsyncadd [#allocation3], %s16
      %s19 = sshll.u32 [#allocation2], 4
      %s20 = int_to_ptr.vmem [resolvable:$true] %s19
      %22 = dma.hbm_to_vmem [thread:$0]  %s0, 128, %s20, [#allocation3]
    $region5: #{tpu_custom_call.1} parent=1 // pred_fallthru
      _
    // Predicated region
    $region6: #{tpu_custom_call.1} parent=1 // pred_check
      _
    $region7: #{tpu_custom_call.1} parent=1 // pred_check_branch
      %24 = sbr.rel (0) target = $region9
    $region8: #{tpu_custom_call.1} parent=1 // pred_region
      %s26 = ssub.s32 8192, 8192
      %27 = vsyncadd [#allocation6], %s26
      %s28 = sshll.u32 [#allocation5], 4
      %s29 = int_to_ptr.vmem [resolvable:$true] %s28
      %34 = dma.hbm_to_vmem [thread:$0]  %s1, 8192, %s29, [#allocation6], 128, 128, 8
    $region9: #{tpu_custom_call.1} parent=1 // pred_fallthru
      _
    // Predicated region
    $region10: #{tpu_custom_call.1} parent=1 // pred_check
      _
    $region11: #{tpu_custom_call.1} parent=1 // pred_check_branch
      %36 = sbr.rel (0) target = $region13
    $region12: #{tpu_custom_call.1} parent=1 // pred_region
      %s38 = ssub.s32 2048, 2048
      %39 = vsyncadd [#allocation6], %s38
      %s40 = sshll.u32 [#allocation7], 4
      %s41 = int_to_ptr.vmem [resolvable:$true] %s40
      %46 = dma.hbm_to_vmem [thread:$0]  %s2, 2048, %s41, [#allocation6], 128, 128, 8
    $region13: #{tpu_custom_call.1} parent=1 // pred_fallthru
      _
    // Predicated region
    $region14: #{tpu_custom_call.1} parent=1 // pred_check
      _
    $region15: #{tpu_custom_call.1} parent=1 // pred_check_branch
      %48 = sbr.rel (0) target = $region17
    $region16: #{tpu_custom_call.1} parent=1 // pred_region
      _
    $region17: #{tpu_custom_call.1} parent=1 // pred_fallthru
      _
    // Predicated region
    $region18: #{tpu_custom_call.1} parent=1 // pred_check
      _
    $region19: #{tpu_custom_call.1} parent=1 // pred_check_branch
      %50 = sbr.rel (0) target = $region21
    $region20: #{tpu_custom_call.1} parent=1 // pred_region
      _
    $region21: #{tpu_custom_call.1} parent=1 // pred_fallthru
      _
    // Predicated region
    $region22: #{tpu_custom_call.1} parent=1 // pred_check
      _
    $region23: #{tpu_custom_call.1} parent=1 // pred_check_branch
      %52 = sbr.rel (0) target = $region25
    $region24: #{tpu_custom_call.1} parent=1 // pred_region
      %53 = dma.done [#allocation3], 128
    $region25: #{tpu_custom_call.1} parent=1 // pred_fallthru
      _
    // Predicated region
    $region26: #{tpu_custom_call.1} parent=1 // pred_check
      _
    $region27: #{tpu_custom_call.1} parent=1 // pred_check_branch
      %55 = sbr.rel (0) target = $region29
    $region28: #{tpu_custom_call.1} parent=1 // pred_region
      %56 = dma.done [#allocation6], 8192
    $region29: #{tpu_custom_call.1} parent=1 // pred_fallthru
      _
    // Predicated region
    $region30: #{tpu_custom_call.1} parent=1 // pred_check
      _
    $region31: #{tpu_custom_call.1} parent=1 // pred_check_branch
      %58 = sbr.rel (0) target = $region33
    $region32: #{tpu_custom_call.1} parent=1 // pred_region
      %59 = dma.done [#allocation6], 2048
    $region33: #{tpu_custom_call.1} parent=1 // pred_fallthru
      _
    %v60 = vlaneseq
    %v61 = vand.u32 %v60, 127
    %v62 = vadd.s32 %v61, 128
    %v63 = vadd.s32 %v61, 256
    %v64 = vadd.s32 %v61, 384
    %v65 = vld [vmem:[#allocation2] sm:$0xff]
    %66 = vset.pattern.permute.xlu0 0
    %67 = vperm.xlu0 %66, %v65
    %v68 = vpop.permute.xlu0 %67
    %vm69 = vcmp.eq.s32.totalorder %v68, %v61
    %vm70 = vcmp.eq.s32.totalorder %v68, %v62
    %vm71 = vcmp.eq.s32.totalorder %v68, %v63
    %vm72 = vcmp.eq.s32.totalorder %v68, %v64
    %73 = vset.pattern.permute.xlu0 1
    %74 = vperm.xlu0 %73, %v65
    %v75 = vpop.permute.xlu0 %74
    %vm76 = vcmp.eq.s32.totalorder %v75, %v61
    %vm77 = vcmp.eq.s32.totalorder %v75, %v62
    %vm78 = vcmp.eq.s32.totalorder %v75, %v63
    %vm79 = vcmp.eq.s32.totalorder %v75, %v64
    %vm80 = vmor %vm69, %vm76
    %vm81 = vmor %vm70, %vm77
    %vm82 = vmor %vm71, %vm78
    %vm83 = vmor %vm72, %vm79
    %84 = vset.pattern.permute.xlu0 2
    %85 = vperm.xlu0 %84, %v65
    %v86 = vpop.permute.xlu0 %85
    %vm87 = vcmp.eq.s32.totalorder %v86, %v61
    %vm88 = vcmp.eq.s32.totalorder %v86, %v62
    %vm89 = vcmp.eq.s32.totalorder %v86, %v63
    %vm90 = vcmp.eq.s32.totalorder %v86, %v64
    %vm91 = vmor %vm80, %vm87
    %vm92 = vmor %vm81, %vm88
    %vm93 = vmor %vm82, %vm89
    %vm94 = vmor %vm83, %vm90
    %95 = vset.pattern.permute.xlu0 3
    %96 = vperm.xlu0 %95, %v65
    %v97 = vpop.permute.xlu0 %96
    %vm98 = vcmp.eq.s32.totalorder %v97, %v61
    %vm99 = vcmp.eq.s32.totalorder %v97, %v62
    %vm100 = vcmp.eq.s32.totalorder %v97, %v63
    %vm101 = vcmp.eq.s32.totalorder %v97, %v64
    %vm102 = vmor %vm91, %vm98
    %vm103 = vmor %vm92, %vm99
    %vm104 = vmor %vm93, %vm100
    %vm105 = vmor %vm94, %vm101
    %106 = vset.pattern.permute.xlu0 4
    %107 = vperm.xlu0 %106, %v65
    %v108 = vpop.permute.xlu0 %107
    %vm109 = vcmp.eq.s32.totalorder %v108, %v61
    %vm110 = vcmp.eq.s32.totalorder %v108, %v62
    %vm111 = vcmp.eq.s32.totalorder %v108, %v63
    %vm112 = vcmp.eq.s32.totalorder %v108, %v64
    %vm113 = vmor %vm102, %vm109
    %vm114 = vmor %vm103, %vm110
    %vm115 = vmor %vm104, %vm111
    %vm116 = vmor %vm105, %vm112
    %117 = vset.pattern.permute.xlu0 5
    %118 = vperm.xlu0 %117, %v65
    %v119 = vpop.permute.xlu0 %118
    %vm120 = vcmp.eq.s32.totalorder %v119, %v61
    %vm121 = vcmp.eq.s32.totalorder %v119, %v62
    %vm122 = vcmp.eq.s32.totalorder %v119, %v63
    %vm123 = vcmp.eq.s32.totalorder %v119, %v64
    %vm124 = vmor %vm113, %vm120
    %vm125 = vmor %vm114, %vm121
    %vm126 = vmor %vm115, %vm122
    %vm127 = vmor %vm116, %vm123
    %128 = vset.pattern.permute.xlu0 6
    %129 = vperm.xlu0 %128, %v65
    %v130 = vpop.permute.xlu0 %129
    %vm131 = vcmp.eq.s32.totalorder %v130, %v61
    %vm132 = vcmp.eq.s32.totalorder %v130, %v62
    %vm133 = vcmp.eq.s32.totalorder %v130, %v63
    %vm134 = vcmp.eq.s32.totalorder %v130, %v64
    %vm135 = vmor %vm124, %vm131
    %vm136 = vmor %vm125, %vm132
    %vm137 = vmor %vm126, %vm133
    %vm138 = vmor %vm127, %vm134
    %139 = vset.pattern.permute.xlu0 7
    %140 = vperm.xlu0 %139, %v65
    %v141 = vpop.permute.xlu0 %140
    %vm142 = vcmp.eq.s32.totalorder %v141, %v61
    %vm143 = vcmp.eq.s32.totalorder %v141, %v62
    %vm144 = vcmp.eq.s32.totalorder %v141, %v63
    %vm145 = vcmp.eq.s32.totalorder %v141, %v64
    %vm146 = vmor %vm135, %vm142
    %vm147 = vmor %vm136, %vm143
    %vm148 = vmor %vm137, %vm144
    %vm149 = vmor %vm138, %vm145
    %150 = vset.pattern.permute.xlu0 8
    %151 = vperm.xlu0 %150, %v65
    %v152 = vpop.permute.xlu0 %151
    %vm153 = vcmp.eq.s32.totalorder %v152, %v61
    %vm154 = vcmp.eq.s32.totalorder %v152, %v62
    %vm155 = vcmp.eq.s32.totalorder %v152, %v63
    %vm156 = vcmp.eq.s32.totalorder %v152, %v64
    %vm157 = vmor %vm146, %vm153
    %vm158 = vmor %vm147, %vm154
    %vm159 = vmor %vm148, %vm155
    %vm160 = vmor %vm149, %vm156
    %161 = vset.pattern.permute.xlu0 9
    %162 = vperm.xlu0 %161, %v65
    %v163 = vpop.permute.xlu0 %162
    %vm164 = vcmp.eq.s32.totalorder %v163, %v61
    %vm165 = vcmp.eq.s32.totalorder %v163, %v62
    %vm166 = vcmp.eq.s32.totalorder %v163, %v63
    %vm167 = vcmp.eq.s32.totalorder %v163, %v64
    %vm168 = vmor %vm157, %vm164
    %vm169 = vmor %vm158, %vm165
    %vm170 = vmor %vm159, %vm166
    %vm171 = vmor %vm160, %vm167
    %172 = vset.pattern.permute.xlu0 10
    %173 = vperm.xlu0 %172, %v65
    %v174 = vpop.permute.xlu0 %173
    %vm175 = vcmp.eq.s32.totalorder %v174, %v61
    %vm176 = vcmp.eq.s32.totalorder %v174, %v62
    %vm177 = vcmp.eq.s32.totalorder %v174, %v63
    %vm178 = vcmp.eq.s32.totalorder %v174, %v64
    %vm179 = vmor %vm168, %vm175
    %vm180 = vmor %vm169, %vm176
    %vm181 = vmor %vm170, %vm177
    %vm182 = vmor %vm171, %vm178
    %183 = vset.pattern.permute.xlu0 11
    %184 = vperm.xlu0 %183, %v65
    %v185 = vpop.permute.xlu0 %184
    %vm186 = vcmp.eq.s32.totalorder %v185, %v61
    %vm187 = vcmp.eq.s32.totalorder %v185, %v62
    %vm188 = vcmp.eq.s32.totalorder %v185, %v63
    %vm189 = vcmp.eq.s32.totalorder %v185, %v64
    %vm190 = vmor %vm179, %vm186
    %vm191 = vmor %vm180, %vm187
    %vm192 = vmor %vm181, %vm188
    %vm193 = vmor %vm182, %vm189
    %v194 = vsel %vm190, 1, 0
    %v195 = vsel %vm191, 1, 0
    %v196 = vsel %vm192, 1, 0
    %v197 = vsel %vm193, 1, 0
    %v198 = vcvt.s32.f32 %v194
    %v199 = vcvt.s32.f32 %v195
    %v200 = vcvt.s32.f32 %v196
    %v201 = vcvt.s32.f32 %v197
    %v202 = vld [vmem:[#allocation5] sm:$0xff]
    %v203 = vld [vmem:[#allocation5 + $0x8] sm:$0xff]
    %v204 = vld [vmem:[#allocation5 + $0x10] sm:$0xff]
    %v205 = vld [vmem:[#allocation5 + $0x18] sm:$0xff]
    %v206 = vld [vmem:[#allocation5 + $0x20] sm:$0xff]
    %v207 = vld [vmem:[#allocation5 + $0x28] sm:$0xff]
    %v208 = vld [vmem:[#allocation5 + $0x30] sm:$0xff]
    %v209 = vld [vmem:[#allocation5 + $0x38] sm:$0xff]
    %v210 = vld [vmem:[#allocation5 + $0x40] sm:$0xff]
    %v211 = vld [vmem:[#allocation5 + $0x48] sm:$0xff]
    %v212 = vld [vmem:[#allocation5 + $0x50] sm:$0xff]
    %v213 = vld [vmem:[#allocation5 + $0x58] sm:$0xff]
    %v214 = vld [vmem:[#allocation5 + $0x60] sm:$0xff]
    %v215 = vld [vmem:[#allocation5 + $0x68] sm:$0xff]
    %v216 = vld [vmem:[#allocation5 + $0x70] sm:$0xff]
    %v217 = vld [vmem:[#allocation5 + $0x78] sm:$0xff]
    %v218 = vld [vmem:[#allocation5 + $0x80] sm:$0xff]
    %v219 = vld [vmem:[#allocation5 + $0x88] sm:$0xff]
    %v220 = vld [vmem:[#allocation5 + $0x90] sm:$0xff]
    %v221 = vld [vmem:[#allocation5 + $0x98] sm:$0xff]
    %v222 = vld [vmem:[#allocation5 + $0xa0] sm:$0xff]
    %v223 = vld [vmem:[#allocation5 + $0xa8] sm:$0xff]
    %v224 = vld [vmem:[#allocation5 + $0xb0] sm:$0xff]
    %v225 = vld [vmem:[#allocation5 + $0xb8] sm:$0xff]
    %v226 = vld [vmem:[#allocation5 + $0xc0] sm:$0xff]
    %v227 = vld [vmem:[#allocation5 + $0xc8] sm:$0xff]
    %v228 = vld [vmem:[#allocation5 + $0xd0] sm:$0xff]
    %v229 = vld [vmem:[#allocation5 + $0xd8] sm:$0xff]
    %v230 = vld [vmem:[#allocation5 + $0xe0] sm:$0xff]
    %v231 = vld [vmem:[#allocation5 + $0xe8] sm:$0xff]
    %v232 = vld [vmem:[#allocation5 + $0xf0] sm:$0xff]
    %v233 = vld [vmem:[#allocation5 + $0xf8] sm:$0xff]
    %v234 = vld [vmem:[#allocation5 + $0x100] sm:$0xff]
    %v235 = vld [vmem:[#allocation5 + $0x108] sm:$0xff]
    %v236 = vld [vmem:[#allocation5 + $0x110] sm:$0xff]
    %v237 = vld [vmem:[#allocation5 + $0x118] sm:$0xff]
    %v238 = vld [vmem:[#allocation5 + $0x120] sm:$0xff]
    %v239 = vld [vmem:[#allocation5 + $0x128] sm:$0xff]
    %v240 = vld [vmem:[#allocation5 + $0x130] sm:$0xff]
    %v241 = vld [vmem:[#allocation5 + $0x138] sm:$0xff]
    %v242 = vld [vmem:[#allocation5 + $0x140] sm:$0xff]
    %v243 = vld [vmem:[#allocation5 + $0x148] sm:$0xff]
    %v244 = vld [vmem:[#allocation5 + $0x150] sm:$0xff]
    %v245 = vld [vmem:[#allocation5 + $0x158] sm:$0xff]
    %v246 = vld [vmem:[#allocation5 + $0x160] sm:$0xff]
    %v247 = vld [vmem:[#allocation5 + $0x168] sm:$0xff]
    %v248 = vld [vmem:[#allocation5 + $0x170] sm:$0xff]
    %v249 = vld [vmem:[#allocation5 + $0x178] sm:$0xff]
    %v250 = vld [vmem:[#allocation5 + $0x180] sm:$0xff]
    %v251 = vld [vmem:[#allocation5 + $0x188] sm:$0xff]
    %v252 = vld [vmem:[#allocation5 + $0x190] sm:$0xff]
    %v253 = vld [vmem:[#allocation5 + $0x198] sm:$0xff]
    %v254 = vld [vmem:[#allocation5 + $0x1a0] sm:$0xff]
    %v255 = vld [vmem:[#allocation5 + $0x1a8] sm:$0xff]
    %v256 = vld [vmem:[#allocation5 + $0x1b0] sm:$0xff]
    %v257 = vld [vmem:[#allocation5 + $0x1b8] sm:$0xff]
    %v258 = vld [vmem:[#allocation5 + $0x1c0] sm:$0xff]
    %v259 = vld [vmem:[#allocation5 + $0x1c8] sm:$0xff]
    %v260 = vld [vmem:[#allocation5 + $0x1d0] sm:$0xff]
    %v261 = vld [vmem:[#allocation5 + $0x1d8] sm:$0xff]
    %v262 = vld [vmem:[#allocation5 + $0x1e0] sm:$0xff]
    %v263 = vld [vmem:[#allocation5 + $0x1e8] sm:$0xff]
    %v264 = vld [vmem:[#allocation5 + $0x1f0] sm:$0xff]
    %v265 = vld [vmem:[#allocation5 + $0x1f8] sm:$0xff]
    %266 = vmatprep.subr.mxu0 0.0
    %267 = vmatpush1.msra.mxu0 %v202
    %268 = vmatprep.subr.mxu0 0.0
    %269 = vmatpush1.msra.mxu0 %v203
    %270 = vmatprep.subr.mxu0 0.0
    %271 = vmatpush1.msra.mxu0 %v204
    %272 = vmatprep.subr.mxu0 0.0
    %273 = vmatpush1.msra.mxu0 %v205
    %274 = vmatprep.subr.mxu0 0.0
    %275 = vmatpush1.msra.mxu0 %v206
    %276 = vmatprep.subr.mxu0 0.0
    %277 = vmatpush1.msra.mxu0 %v207
    %278 = vmatprep.subr.mxu0 0.0
    %279 = vmatpush1.msra.mxu0 %v208
    %280 = vmatprep.subr.mxu0 0.0
    %281 = vmatpush1.msra.mxu0 %v209
    %282 = vmatprep.subr.mxu0 0.0
    %283 = vmatpush1.msra.mxu0 %v210
    %284 = vmatprep.subr.mxu0 0.0
    %285 = vmatpush1.msra.mxu0 %v211
    %286 = vmatprep.subr.mxu0 0.0
    %287 = vmatpush1.msra.mxu0 %v212
    %288 = vmatprep.subr.mxu0 0.0
    %289 = vmatpush1.msra.mxu0 %v213
    %290 = vmatprep.subr.mxu0 0.0
    %291 = vmatpush1.msra.mxu0 %v214
    %292 = vmatprep.subr.mxu0 0.0
    %293 = vmatpush1.msra.mxu0 %v215
    %294 = vmatprep.subr.mxu0 0.0
    %295 = vmatpush1.msra.mxu0 %v216
    %296 = vmatprep.subr.mxu0 0.0
    %297 = vmatpush1.msra.mxu0 %v217
    %298 = vmatprep.subr.mxu0 0.0
    %299 = vmatpush1.msra.mxu0 %v218
    %300 = vmatprep.subr.mxu0 0.0
    %301 = vmatpush1.msra.mxu0 %v219
    %302 = vmatprep.subr.mxu0 0.0
    %303 = vmatpush1.msra.mxu0 %v220
    %304 = vmatprep.subr.mxu0 0.0
    %305 = vmatpush1.msra.mxu0 %v221
    %306 = vmatprep.subr.mxu0 0.0
    %307 = vmatpush1.msra.mxu0 %v222
    %308 = vmatprep.subr.mxu0 0.0
    %309 = vmatpush1.msra.mxu0 %v223
    %310 = vmatprep.subr.mxu0 0.0
    %311 = vmatpush1.msra.mxu0 %v224
    %312 = vmatprep.subr.mxu0 0.0
    %313 = vmatpush1.msra.mxu0 %v225
    %314 = vmatprep.subr.mxu0 0.0
    %315 = vmatpush1.msra.mxu0 %v226
    %316 = vmatprep.subr.mxu0 0.0
    %317 = vmatpush1.msra.mxu0 %v227
    %318 = vmatprep.subr.mxu0 0.0
    %319 = vmatpush1.msra.mxu0 %v228
    %320 = vmatprep.subr.mxu0 0.0
    %321 = vmatpush1.msra.mxu0 %v229
    %322 = vmatprep.subr.mxu0 0.0
    %323 = vmatpush1.msra.mxu0 %v230
    %324 = vmatprep.subr.mxu0 0.0
    %325 = vmatpush1.msra.mxu0 %v231
    %326 = vmatprep.subr.mxu0 0.0
    %327 = vmatpush1.msra.mxu0 %v232
    %328 = vmatprep.subr.mxu0 0.0
    %329 = vmatpush1.msra.mxu0 %v233
    %330 = vmatprep.mubr.f32.mxu0 %v199
    %331 = vmatmul.mubr.f32.gmra.mrb[0].mxu0 %v198
    %v332 = vpop.f32.mrb[0].mxu0
    %v333 = vadd.f32 0.0, %v332
    %v334 = vpop.f32.mrb[0].mxu0
    %335 = vdwg.mxu0
    %336 = vmatprep.subr.mxu0 0.0
    %337 = vmatpush1.msra.mxu0 %v234
    %338 = vmatprep.subr.mxu0 0.0
    %339 = vmatpush1.msra.mxu0 %v235
    %340 = vmatprep.subr.mxu0 0.0
    %341 = vmatpush1.msra.mxu0 %v236
    %342 = vmatprep.subr.mxu0 0.0
    %343 = vmatpush1.msra.mxu0 %v237
    %344 = vmatprep.subr.mxu0 0.0
    %345 = vmatpush1.msra.mxu0 %v238
    %346 = vmatprep.subr.mxu0 0.0
    %347 = vmatpush1.msra.mxu0 %v239
    %348 = vmatprep.subr.mxu0 0.0
    %349 = vmatpush1.msra.mxu0 %v240
    %350 = vmatprep.subr.mxu0 0.0
    %351 = vmatpush1.msra.mxu0 %v241
    %352 = vmatprep.subr.mxu0 0.0
    %353 = vmatpush1.msra.mxu0 %v242
    %354 = vmatprep.subr.mxu0 0.0
    %355 = vmatpush1.msra.mxu0 %v243
    %356 = vmatprep.subr.mxu0 0.0
    %357 = vmatpush1.msra.mxu0 %v244
    %358 = vmatprep.subr.mxu0 0.0
    %359 = vmatpush1.msra.mxu0 %v245
    %360 = vmatprep.subr.mxu0 0.0
    %361 = vmatpush1.msra.mxu0 %v246
    %362 = vmatprep.subr.mxu0 0.0
    %363 = vmatpush1.msra.mxu0 %v247
    %364 = vmatprep.subr.mxu0 0.0
    %365 = vmatpush1.msra.mxu0 %v248
    %366 = vmatprep.subr.mxu0 0.0
    %367 = vmatpush1.msra.mxu0 %v249
    %368 = vmatprep.subr.mxu0 0.0
    %369 = vmatpush1.msra.mxu0 %v250
    %370 = vmatprep.subr.mxu0 0.0
    %371 = vmatpush1.msra.mxu0 %v251
    %372 = vmatprep.subr.mxu0 0.0
    %373 = vmatpush1.msra.mxu0 %v252
    %374 = vmatprep.subr.mxu0 0.0
    %375 = vmatpush1.msra.mxu0 %v253
    %376 = vmatprep.subr.mxu0 0.0
    %377 = vmatpush1.msra.mxu0 %v254
    %378 = vmatprep.subr.mxu0 0.0
    %379 = vmatpush1.msra.mxu0 %v255
    %380 = vmatprep.subr.mxu0 0.0
    %381 = vmatpush1.msra.mxu0 %v256
    %382 = vmatprep.subr.mxu0 0.0
    %383 = vmatpush1.msra.mxu0 %v257
    %384 = vmatprep.subr.mxu0 0.0
    %385 = vmatpush1.msra.mxu0 %v258
    %386 = vmatprep.subr.mxu0 0.0
    %387 = vmatpush1.msra.mxu0 %v259
    %388 = vmatprep.subr.mxu0 0.0
    %389 = vmatpush1.msra.mxu0 %v260
    %390 = vmatprep.subr.mxu0 0.0
    %391 = vmatpush1.msra.mxu0 %v261
    %392 = vmatprep.subr.mxu0 0.0
    %393 = vmatpush1.msra.mxu0 %v262
    %394 = vmatprep.subr.mxu0 0.0
    %395 = vmatpush1.msra.mxu0 %v263
    %396 = vmatprep.subr.mxu0 0.0
    %397 = vmatpush1.msra.mxu0 %v264
    %398 = vmatprep.subr.mxu0 0.0
    %399 = vmatpush1.msra.mxu0 %v265
    %400 = vmatprep.mubr.f32.mxu0 %v201
    %401 = vmatmul.mubr.f32.gmra.mrb[0].mxu0 %v200
    %v402 = vpop.f32.mrb[0].mxu0
    %v403 = vadd.f32 %v333, %v402
    %v404 = vpop.f32.mrb[0].mxu0
    %405 = vdwg.mxu0
    %v406 = vld [vmem:[#allocation7] sm:$0xff]
    %v407 = vld [vmem:[#allocation7 + $0x8] sm:$0xff]
    %v408 = vld [vmem:[#allocation7 + $0x10] sm:$0xff]
    %v409 = vld [vmem:[#allocation7 + $0x18] sm:$0xff]
    %v410 = vld [vmem:[#allocation7 + $0x20] sm:$0xff]
    %v411 = vld [vmem:[#allocation7 + $0x28] sm:$0xff]
    %v412 = vld [vmem:[#allocation7 + $0x30] sm:$0xff]
    %v413 = vld [vmem:[#allocation7 + $0x38] sm:$0xff]
    %v414 = vld [vmem:[#allocation7 + $0x40] sm:$0xff]
    %v415 = vld [vmem:[#allocation7 + $0x48] sm:$0xff]
    %v416 = vld [vmem:[#allocation7 + $0x50] sm:$0xff]
    %v417 = vld [vmem:[#allocation7 + $0x58] sm:$0xff]
    %v418 = vld [vmem:[#allocation7 + $0x60] sm:$0xff]
    %v419 = vld [vmem:[#allocation7 + $0x68] sm:$0xff]
    %v420 = vld [vmem:[#allocation7 + $0x70] sm:$0xff]
    %v421 = vld [vmem:[#allocation7 + $0x78] sm:$0xff]
    %422 = vmatprep.subr.mxu0 0.0
    %423 = vmatpush1.msra.mxu0 %v406
    %424 = vmatprep.subr.mxu0 0.0
    %425 = vmatpush1.msra.mxu0 %v407
    %426 = vmatprep.subr.mxu0 0.0
    %427 = vmatpush1.msra.mxu0 %v408
    %428 = vmatprep.subr.mxu0 0.0
    %429 = vmatpush1.msra.mxu0 %v409
    %430 = vmatprep.subr.mxu0 0.0
    %431 = vmatpush1.msra.mxu0 %v410
    %432 = vmatprep.subr.mxu0 0.0
    %433 = vmatpush1.msra.mxu0 %v411
    %434 = vmatprep.subr.mxu0 0.0
    %435 = vmatpush1.msra.mxu0 %v412
    %436 = vmatprep.subr.mxu0 0.0
    %437 = vmatpush1.msra.mxu0 %v413
    %438 = vmatprep.subr.mxu0 0.0
    %439 = vmatpush1.msra.mxu0 %v414
    %440 = vmatprep.subr.mxu0 0.0
    %441 = vmatpush1.msra.mxu0 %v415
    %442 = vmatprep.subr.mxu0 0.0
    %443 = vmatpush1.msra.mxu0 %v416
    %444 = vmatprep.subr.mxu0 0.0
    %445 = vmatpush1.msra.mxu0 %v417
    %446 = vmatprep.subr.mxu0 0.0
    %447 = vmatpush1.msra.mxu0 %v418
    %448 = vmatprep.subr.mxu0 0.0
    %449 = vmatpush1.msra.mxu0 %v419
    %450 = vmatprep.subr.mxu0 0.0
    %451 = vmatpush1.msra.mxu0 %v420
    %452 = vmatprep.subr.mxu0 0.0
    %453 = vmatpush1.msra.mxu0 %v421
    %454 = vmatprep.subr.mxu0 0.0
    %455 = vmatpush1.msra.mxu0 0.0
    %456 = vmatprep.subr.mxu0 0.0
    %457 = vmatpush1.msra.mxu0 0.0
    %458 = vmatprep.subr.mxu0 0.0
    %459 = vmatpush1.msra.mxu0 0.0
    %460 = vmatprep.subr.mxu0 0.0
    %461 = vmatpush1.msra.mxu0 0.0
    %462 = vmatprep.subr.mxu0 0.0
    %463 = vmatpush1.msra.mxu0 0.0
    %464 = vmatprep.subr.mxu0 0.0
    %465 = vmatpush1.msra.mxu0 0.0
    %466 = vmatprep.subr.mxu0 0.0
    %467 = vmatpush1.msra.mxu0 0.0
    %468 = vmatprep.subr.mxu0 0.0
    %469 = vmatpush1.msra.mxu0 0.0
    %470 = vmatprep.subr.mxu0 0.0
    %471 = vmatpush1.msra.mxu0 0.0
    %472 = vmatprep.subr.mxu0 0.0
    %473 = vmatpush1.msra.mxu0 0.0
    %474 = vmatprep.subr.mxu0 0.0
    %475 = vmatpush1.msra.mxu0 0.0
    %476 = vmatprep.subr.mxu0 0.0
    %477 = vmatpush1.msra.mxu0 0.0
    %478 = vmatprep.subr.mxu0 0.0
    %479 = vmatpush1.msra.mxu0 0.0
    %480 = vmatprep.subr.mxu0 0.0
    %481 = vmatpush1.msra.mxu0 0.0
    %482 = vmatprep.subr.mxu0 0.0
    %483 = vmatpush1.msra.mxu0 0.0
    %484 = vmatprep.subr.mxu0 0.0
    %485 = vmatpush1.msra.mxu0 0.0
    %486 = vmatprep.mubr.f32.mxu0 0.0
    %487 = vmatmul.mubr.f32.gmra.mrb[0].mxu0 %v403
    %v488 = vpop.f32.mrb[0].mxu0
    %v489 = vadd.f32 0.0, %v488
    %v490 = vpop.f32.mrb[0].mxu0
    %491 = vdwg.mxu0
    %v492 = vsub.f32 %v403, %v489
    %v493 = vmul.f32 %v492, %v492
    %494 = vmatprep.subr.mxu0 0.0
    %495 = vmatpush1.msra.mxu0 %v406
    %496 = vmatprep.subr.mxu0 0.0
    %497 = vmatpush1.msra.mxu0 %v407
    %498 = vmatprep.subr.mxu0 0.0
    %499 = vmatpush1.msra.mxu0 %v408
    %500 = vmatprep.subr.mxu0 0.0
    %501 = vmatpush1.msra.mxu0 %v409
    %502 = vmatprep.subr.mxu0 0.0
    %503 = vmatpush1.msra.mxu0 %v410
    %504 = vmatprep.subr.mxu0 0.0
    %505 = vmatpush1.msra.mxu0 %v411
    %506 = vmatprep.subr.mxu0 0.0
    %507 = vmatpush1.msra.mxu0 %v412
    %508 = vmatprep.subr.mxu0 0.0
    %509 = vmatpush1.msra.mxu0 %v413
    %510 = vmatprep.subr.mxu0 0.0
    %511 = vmatpush1.msra.mxu0 %v414
    %512 = vmatprep.subr.mxu0 0.0
    %513 = vmatpush1.msra.mxu0 %v415
    %514 = vmatprep.subr.mxu0 0.0
    %515 = vmatpush1.msra.mxu0 %v416
    %516 = vmatprep.subr.mxu0 0.0
    %517 = vmatpush1.msra.mxu0 %v417
    %518 = vmatprep.subr.mxu0 0.0
    %519 = vmatpush1.msra.mxu0 %v418
    %520 = vmatprep.subr.mxu0 0.0
    %521 = vmatpush1.msra.mxu0 %v419
    %522 = vmatprep.subr.mxu0 0.0
    %523 = vmatpush1.msra.mxu0 %v420
    %524 = vmatprep.subr.mxu0 0.0
    %525 = vmatpush1.msra.mxu0 %v421
    %526 = vmatprep.subr.mxu0 0.0
    %527 = vmatpush1.msra.mxu0 0.0
    %528 = vmatprep.subr.mxu0 0.0
    %529 = vmatpush1.msra.mxu0 0.0
    %530 = vmatprep.subr.mxu0 0.0
    %531 = vmatpush1.msra.mxu0 0.0
    %532 = vmatprep.subr.mxu0 0.0
    %533 = vmatpush1.msra.mxu0 0.0
    %534 = vmatprep.subr.mxu0 0.0
    %535 = vmatpush1.msra.mxu0 0.0
    %536 = vmatprep.subr.mxu0 0.0
    %537 = vmatpush1.msra.mxu0 0.0
    %538 = vmatprep.subr.mxu0 0.0
    %539 = vmatpush1.msra.mxu0 0.0
    %540 = vmatprep.subr.mxu0 0.0
    %541 = vmatpush1.msra.mxu0 0.0
    %542 = vmatprep.subr.mxu0 0.0
    %543 = vmatpush1.msra.mxu0 0.0
    %544 = vmatprep.subr.mxu0 0.0
    %545 = vmatpush1.msra.mxu0 0.0
    %546 = vmatprep.subr.mxu0 0.0
    %547 = vmatpush1.msra.mxu0 0.0
    %548 = vmatprep.subr.mxu0 0.0
    %549 = vmatpush1.msra.mxu0 0.0
    %550 = vmatprep.subr.mxu0 0.0
    %551 = vmatpush1.msra.mxu0 0.0
    %552 = vmatprep.subr.mxu0 0.0
    %553 = vmatpush1.msra.mxu0 0.0
    %554 = vmatprep.subr.mxu0 0.0
    %555 = vmatpush1.msra.mxu0 0.0
    %556 = vmatprep.subr.mxu0 0.0
    %557 = vmatpush1.msra.mxu0 0.0
    %558 = vmatprep.mubr.f32.mxu0 0.0
    %559 = vmatmul.mubr.f32.gmra.mrb[0].mxu0 %v493
    %v560 = vpop.f32.mrb[0].mxu0
    %v561 = vadd.f32 1e-12, %v560
    %v562 = vpop.f32.mrb[0].mxu0
    %563 = vdwg.mxu0
    %v564 = vrsqrt.pop %v561
    %v565 = vmul.f32 %v492, %v564
    %v566 = vld [vmem:[%s3] sm:$0x1]
    %v568 = vlaneseq
    %v569 = vshrl.u32 %v568, 7
    %v570 = vsub.s32 0, %v569
    %v571 = vrot.slane %v566, %v570
    %v573 = vmul.f32 %v565, %v571
    %v574 = vld [vmem:[%s4] sm:$0x1]
    %v576 = vlaneseq
    %v577 = vshrl.u32 %v576, 7
    %v578 = vsub.s32 0, %v577
    %v579 = vrot.slane %v574, %v578
    %v581 = vadd.f32 %v573, %v579
    %582 = vst [vmem:[#allocation8] sm:$0xff] %v581
    // Predicated region
    $region34: #{tpu_custom_call.1} parent=1 // pred_check
      _
    $region35: #{tpu_custom_call.1} parent=1 // pred_check_branch
      %584 = sbr.rel (0) target = $region37
    $region36: #{tpu_custom_call.1} parent=1 // pred_region
      %s586 = ssub.s32 128, 128
      %587 = vsyncadd [#allocation4], %s586
      %s589 = sshll.u32 [#allocation8], 4
      %s590 = int_to_ptr.vmem [resolvable:$true] %s589
      %592 = dma.vmem_to_hbm [thread:$0]  %s590, 128, %s5, [#allocation4]
    $region37: #{tpu_custom_call.1} parent=1 // pred_fallthru
      _
    // Predicated region
    $region38: #{tpu_custom_call.1} parent=1 // pred_check
      _
    $region39: #{tpu_custom_call.1} parent=1 // pred_check_branch
      %594 = sbr.rel (0) target = $region41
    $region40: #{tpu_custom_call.1} parent=1 // pred_region
      %595 = dma.done [#allocation4], 128
    $region41: #{tpu_custom_call.1} parent=1 // pred_fallthru
      _
    %596 = vsyncpa [#allocation3], 1
    %597 = vsyncpa [#allocation6], 1
    %598 = vsyncpa [#allocation4], 1

</llo_original>
